<compile_context>
chip_gen: v7x
topology: tpu7x:2x2x1
jax: 0.10.0
libtpu: 0.0.40
codegen_flags: <defaults>
</compile_context>

<pallas_src>
import functools

import jax
import jax.numpy as jnp
from jax import lax
from jax.experimental import pallas as pl
from jax.experimental.pallas import tpu as pltpu


def _pick_row_tile(B):
    """Row-tile size TM with B % TM == 0 (single block for small B)."""
    if B <= 512:
        return B
    for tm in (512, 256, 128, 64, 32, 16, 8):
        if B % tm == 0:
            return tm
    return B  # fall back to a single block


def _pair_pair_supcon_kernel(x_ref, rawsum_ref, logv_ref, *,
                             temperature, tm, matmul_dtype):
    eps2 = 1e-24                      # (F.normalize eps=1e-12)^2, for rsqrt guards
    inv_t = 1.0 / temperature
    i = pl.program_id(0)

    # Full feature matrix (columns j of every pair); resident across grid steps.
    x = x_ref[...].astype(jnp.float32)            # (B, K)
    B = x.shape[0]

    # F.normalize(features, dim=1): one rsqrt (EUP) + VPU multiply.
    f = x * lax.rsqrt(jnp.maximum(jnp.sum(x * x, axis=1, keepdims=True), eps2))
    f2 = f * f
    f4 = f2 * f2

    # Row block handled by this grid step.
    r0 = pl.multiple_of(i * tm, tm)
    xr = x_ref[pl.ds(r0, tm), :].astype(jnp.float32)          # (tm, K)
    fr = xr * lax.rsqrt(jnp.maximum(jnp.sum(xr * xr, axis=1, keepdims=True), eps2))
    fr2 = fr * fr
    fr3 = fr2 * fr
    fr4 = fr2 * fr2

    cast = lambda a: a.astype(matmul_dtype)

    # Pre-transpose each distinct RHS once; dots issued as [M,K] x [K,N].
    fT = cast(f).T                                             # (K, B)
    f2T = cast(f2).T
    f4T = cast(f4).T

    def mm(a, bT):
        return jnp.dot(cast(a), bT, preferred_element_type=jnp.float32)

    # Fuse dots that share an RHS by stacking LHS along M (fills the MXU better
    # at small/medium B and amortizes the RHS load): 3 MXU dots total.
    t = fr3 + 1.0
    lhs_f = jnp.concatenate([fr4 + fr, fr], axis=0)            # (2*tm, K)
    lhs_f2 = jnp.concatenate([t * t, fr3], axis=0)             # (2*tm, K)

    A = mm(lhs_f, fT)          # (2tm, B): [ <f_i, self_i> ; <f_i, f_j> ]
    Bm = mm(lhs_f2, f2T)       # (2tm, B): [ ||self_i||^2  ; G32 = sum_k f_i^3 f_j^2 ]
    G44 = mm(fr4, f4T)         # (tm, B)

    num_self_i = A[:tm]
    dot_ff = A[tm:]
    nsq_self_i = Bm[:tm]
    G32 = Bm[tm:]

    if tm == B:
        # Square (single-block) case: sum_k f_i^2 f_j^3 is just G32 transposed
        # (XLU work, overlaps with the remaining MXU pushes).
        G23 = G32.T
    else:
        G23 = mm(fr2, cast(f2 * f).T)

    num_other = G32 + dot_ff
    # + sum_k f_j^2 == 1.0 because rows of f are L2-normalized
    # (assumes no all-zero feature row; the eps guard maps such a row to 0).
    nsq_other = G44 + 2.0 * G23 + 1.0

    # One rsqrt per element instead of sqrt + two divides.
    raw_self_i = num_self_i * lax.rsqrt(jnp.maximum(nsq_self_i, eps2)) * inv_t
    raw_other = num_other * lax.rsqrt(jnp.maximum(nsq_other, eps2)) * inv_t

    # logits_mask = 1 - eye(B), restricted to this row block.
    rowg = r0 + lax.broadcasted_iota(jnp.int32, (tm, B), 0)
    col = lax.broadcasted_iota(jnp.int32, (tm, B), 1)
    mask = jnp.where(rowg == col, 0.0, 1.0)

    # self_j / other_i / other_j logits all coincide with raw_other (PyTorch
    # code reuses features_other_j), so the denominator is exp_self + 3*exp_other.
    vs_all = jnp.sum(mask * (jnp.exp(raw_self_i) + 3.0 * jnp.exp(raw_other)),
                     axis=1, keepdims=True)                    # (tm, 1)

    # loss = -(1/B^2) * sum_ij (raw_self_i[i,j] - log vs_all[i])
    # -> emit per-row partials; tiny final combine happens in the wrapper.
    rawsum_ref[...] = jnp.sum(raw_self_i, axis=1, keepdims=True)
    logv_ref[...] = jnp.log(vs_all)


def pair_pair_supcon_loss(features, temperature=0.07, matmul_dtype=jnp.float32):
    """Pallas TPU implementation of PairPairSupConLoss.forward.

    matmul_dtype=jnp.bfloat16 enables bf16 MXU operands (recommended on
    v6e/v7x for large K); default f32 keeps bit-level parity at small K.
    """
    B, K = features.shape
    tm = _pick_row_tile(B)
    nb = B // tm

    kernel = functools.partial(_pair_pair_supcon_kernel,
                               temperature=float(temperature),
                               tm=tm, matmul_dtype=matmul_dtype)

    # Advisory cost estimate for XLA scheduling around the custom call.
    cost = pl.CostEstimate(flops=2 * 5 * B * B * K + 10 * B * K,
                           transcendentals=4 * B * B + 2 * B,
                           bytes_accessed=4 * B * K + 8 * B)

    # Scoped-VMEM sizing: column-side feature powers + per-step (tm,B) logits,
    # with generous margin; clamped to stay under physical VMEM (v7x: 64 MiB).
    live_bytes = 4 * (10 * B * K + 16 * tm * B) + (4 << 20)
    vmem_limit = int(min(64 * 1024 * 1024, max(live_bytes, 16 * 1024 * 1024)))

    rawsum, logv = pl.pallas_call(
        kernel,
        out_shape=(jax.ShapeDtypeStruct((B, 1), jnp.float32),
                   jax.ShapeDtypeStruct((B, 1), jnp.float32)),
        grid=(nb,),
        in_specs=[pl.BlockSpec((B, K), lambda i: (0, 0))],
        out_specs=(pl.BlockSpec((tm, 1), lambda i: (i, 0)),
                   pl.BlockSpec((tm, 1), lambda i: (i, 0))),
        compiler_params=pltpu.CompilerParams(
            dimension_semantics=("parallel",),
            vmem_limit_bytes=vmem_limit),
        cost_estimate=cost,
    )(features)

    Bf = float(B)
    return -(jnp.sum(rawsum) - Bf * jnp.sum(logv)) / (Bf * Bf)


def _reference_loss(x, temperature=0.07):
    """Pure-JAX transcription of the PyTorch forward (rank-3 einsums)."""
    eps = 1e-12
    B = x.shape[0]
    f = x / jnp.maximum(jnp.linalg.norm(x, axis=1, keepdims=True), eps)
    mutual = jnp.einsum('ik,jk->ijk', f, f)
    gate_i = jnp.einsum('ik,ijk->ijk', f, mutual)
    gate_j = jnp.einsum('jk,ijk->ijk', f, mutual)

    def l2n(v):
        return v / jnp.maximum(jnp.linalg.norm(v, axis=2, keepdims=True), eps)

    fsi = l2n(jnp.einsum('ik,ijk->ijk', f, gate_i) + f)
    foi = l2n(jnp.einsum('ik,ijk->ijk', f, gate_j) + f)
    foj = l2n(jnp.einsum('jk,ijk->ijk', f, gate_i) + f)

    mask = 1.0 - jnp.eye(B, dtype=f.dtype)
    rsi = jnp.einsum('ik,ijk->ij', f, fsi) / temperature
    rsj = jnp.einsum('ik,ijk->ij', f, foj) / temperature   # PyTorch quirk kept: uses other_j
    roi = jnp.einsum('ik,ijk->ij', f, foi) / temperature
    roj = jnp.einsum('ik,ijk->ij', f, foj) / temperature
    esi = jnp.exp(rsi) * mask
    esj = jnp.exp(rsj) * mask
    eoi = jnp.exp(roi) * mask
    eoj = jnp.exp(roj) * mask
    vs_all = jnp.sum(esi + esj + eoi + eoj, axis=1, keepdims=True)
    log_prob = rsi - jnp.log(vs_all)
    return -jnp.mean(jnp.sum(log_prob, axis=1) / B)


if __name__ == "__main__":
    key = jax.random.PRNGKey(0)
    features = jax.random.normal(key, (8, 32), dtype=jnp.float32)

    loss = jax.jit(pair_pair_supcon_loss)(features)
    jax.block_until_ready(loss)

    ref = _reference_loss(features)
    assert bool(jnp.isfinite(loss)), ("non-finite loss", loss)
    assert jnp.allclose(loss, ref, rtol=2e-3, atol=2e-3), (float(loss), float(ref))
    print("KERNEL_OK")
</pallas_src>

<mosaic_0001>
module attributes {stable_mosaic.version = 11 : i64} {
  func.func @_pair_pair_supcon_kernel(%arg0: i32, %arg1: memref<8x32xf32, #tpu.memory_space<vmem>>, %arg2: memref<8x1xf32, #tpu.memory_space<vmem>>, %arg3: memref<8x1xf32, #tpu.memory_space<vmem>>) attributes {dimension_semantics = [#tpu.dimension_semantics<parallel>], iteration_bounds = array<i64: 1>, scalar_prefetch = 0 : i64, scratch_operands = 0 : i64, tpu.core_type = #tpu.core_type<tc>, window_params = [{pipeline_mode = #tpu.pipeline_mode<synchronous>, transform_indices = @transform_0, window_bounds = array<i64: 8, 32>}, {transform_indices = @transform_1, window_bounds = array<i64: 8, 1>}, {transform_indices = @transform_2, window_bounds = array<i64: 8, 1>}]} {
    %c0 = arith.constant 0 : index
    %c0_0 = arith.constant 0 : index
    %0 = vector.load %arg1[%c0, %c0_0] : memref<8x32xf32, #tpu.memory_space<vmem>>, vector<8x32xf32>
    %1 = arith.mulf %0, %0 : vector<8x32xf32>
    %cst = arith.constant dense<0.000000e+00> : vector<8xf32>
    %2 = vector.multi_reduction <add>, %1, %cst [1] : vector<8x32xf32> to vector<8xf32>
    %3 = vector.shape_cast %2 : vector<8xf32> to vector<8x1xf32>
    %cst_1 = arith.constant 1.000000e-24 : f32
    %4 = vector.broadcast %cst_1 : f32 to vector<8x1xf32>
    %5 = arith.maximumf %3, %4 : vector<8x1xf32>
    %6 = math.rsqrt %5 : vector<8x1xf32>
    %7 = vector.broadcast %6 : vector<8x1xf32> to vector<8x32xf32>
    %8 = arith.mulf %0, %7 : vector<8x32xf32>
    %9 = arith.mulf %8, %8 : vector<8x32xf32>
    %10 = arith.mulf %9, %9 : vector<8x32xf32>
    %c8_i32 = arith.constant 8 : i32
    %11 = arith.muli %arg0, %c8_i32 : i32
    %12 = tpu.assume_multiple %11, 8 : i32
    %13 = arith.index_cast %12 : i32 to index
    %c0_2 = arith.constant 0 : index
    %14 = vector.load %arg1[%13, %c0_2] : memref<8x32xf32, #tpu.memory_space<vmem>>, vector<8x32xf32>
    %15 = arith.mulf %14, %14 : vector<8x32xf32>
    %cst_3 = arith.constant dense<0.000000e+00> : vector<8xf32>
    %16 = vector.multi_reduction <add>, %15, %cst_3 [1] : vector<8x32xf32> to vector<8xf32>
    %17 = vector.shape_cast %16 : vector<8xf32> to vector<8x1xf32>
    %cst_4 = arith.constant 1.000000e-24 : f32
    %18 = vector.broadcast %cst_4 : f32 to vector<8x1xf32>
    %19 = arith.maximumf %17, %18 : vector<8x1xf32>
    %20 = math.rsqrt %19 : vector<8x1xf32>
    %21 = vector.broadcast %20 : vector<8x1xf32> to vector<8x32xf32>
    %22 = arith.mulf %14, %21 : vector<8x32xf32>
    %23 = arith.mulf %22, %22 : vector<8x32xf32>
    %24 = arith.mulf %23, %22 : vector<8x32xf32>
    %25 = arith.mulf %23, %23 : vector<8x32xf32>
    %26 = tpu.transpose %8, [1, 0] : vector<8x32xf32> -> vector<32x8xf32>
    %27 = tpu.transpose %9, [1, 0] : vector<8x32xf32> -> vector<32x8xf32>
    %28 = tpu.transpose %10, [1, 0] : vector<8x32xf32> -> vector<32x8xf32>
    %cst_5 = arith.constant 1.000000e+00 : f32
    %29 = vector.broadcast %cst_5 : f32 to vector<8x32xf32>
    %30 = arith.addf %24, %29 : vector<8x32xf32>
    %31 = arith.addf %25, %22 : vector<8x32xf32>
    %32 = tpu.concatenate %31, %22 in 0 : vector<8x32xf32>, vector<8x32xf32> -> vector<16x32xf32>
    %33 = arith.mulf %30, %30 : vector<8x32xf32>
    %34 = tpu.concatenate %33, %24 in 0 : vector<8x32xf32>, vector<8x32xf32> -> vector<16x32xf32>
    %cst_6 = arith.constant dense<0.000000e+00> : vector<16x8xf32>
    %35 = tpu.matmul %32, %26, %cst_6 {dimension_numbers = #tpu.dot_dimension_numbers<[1], [0], [0], [1], [0, 0, 1, 1], [], []>} : vector<16x32xf32>, vector<32x8xf32>, vector<16x8xf32> -> vector<16x8xf32>
    %cst_7 = arith.constant dense<0.000000e+00> : vector<16x8xf32>
    %36 = tpu.matmul %34, %27, %cst_7 {dimension_numbers = #tpu.dot_dimension_numbers<[1], [0], [0], [1], [0, 0, 1, 1], [], []>} : vector<16x32xf32>, vector<32x8xf32>, vector<16x8xf32> -> vector<16x8xf32>
    %cst_8 = arith.constant dense<0.000000e+00> : vector<8x8xf32>
    %37 = tpu.matmul %25, %28, %cst_8 {dimension_numbers = #tpu.dot_dimension_numbers<[1], [0], [0], [1], [0, 0, 1, 1], [], []>} : vector<8x32xf32>, vector<32x8xf32>, vector<8x8xf32> -> vector<8x8xf32>
    %38 = vector.extract_strided_slice %35 {offsets = [0, 0], sizes = [8, 8], strides = [1, 1]} : vector<16x8xf32> to vector<8x8xf32>
    %39 = vector.extract_strided_slice %35 {offsets = [8, 0], sizes = [8, 8], strides = [1, 1]} : vector<16x8xf32> to vector<8x8xf32>
    %40 = vector.extract_strided_slice %36 {offsets = [0, 0], sizes = [8, 8], strides = [1, 1]} : vector<16x8xf32> to vector<8x8xf32>
    %41 = vector.extract_strided_slice %36 {offsets = [8, 0], sizes = [8, 8], strides = [1, 1]} : vector<16x8xf32> to vector<8x8xf32>
    %42 = tpu.transpose %41, [1, 0] : vector<8x8xf32> -> vector<8x8xf32>
    %43 = arith.addf %41, %39 : vector<8x8xf32>
    %cst_9 = arith.constant 2.000000e+00 : f32
    %44 = vector.broadcast %cst_9 : f32 to vector<8x8xf32>
    %45 = arith.mulf %44, %42 : vector<8x8xf32>
    %46 = arith.addf %37, %45 : vector<8x8xf32>
    %cst_10 = arith.constant 1.000000e+00 : f32
    %47 = vector.broadcast %cst_10 : f32 to vector<8x8xf32>
    %48 = arith.addf %46, %47 : vector<8x8xf32>
    %cst_11 = arith.constant 1.000000e-24 : f32
    %49 = vector.broadcast %cst_11 : f32 to vector<8x8xf32>
    %50 = arith.maximumf %40, %49 : vector<8x8xf32>
    %51 = math.rsqrt %50 : vector<8x8xf32>
    %52 = arith.mulf %38, %51 : vector<8x8xf32>
    %cst_12 = arith.constant 14.2857141 : f32
    %53 = vector.broadcast %cst_12 : f32 to vector<8x8xf32>
    %54 = arith.mulf %52, %53 : vector<8x8xf32>
    %cst_13 = arith.constant 1.000000e-24 : f32
    %55 = vector.broadcast %cst_13 : f32 to vector<8x8xf32>
    %56 = arith.maximumf %48, %55 : vector<8x8xf32>
    %57 = math.rsqrt %56 : vector<8x8xf32>
    %58 = arith.mulf %43, %57 : vector<8x8xf32>
    %cst_14 = arith.constant 14.2857141 : f32
    %59 = vector.broadcast %cst_14 : f32 to vector<8x8xf32>
    %60 = arith.mulf %58, %59 : vector<8x8xf32>
    %61 = tpu.iota {dimensions = array<i32: 0>} : vector<8x8xi32>
    %62 = vector.broadcast %12 : i32 to vector<8x8xi32>
    %63 = arith.addi %62, %61 : vector<8x8xi32>
    %64 = tpu.iota {dimensions = array<i32: 1>} : vector<8x8xi32>
    %65 = arith.cmpi eq, %63, %64 : vector<8x8xi32>
    %cst_15 = arith.constant 0.000000e+00 : f32
    %cst_16 = arith.constant 1.000000e+00 : f32
    %66 = vector.broadcast %cst_15 : f32 to vector<8x8xf32>
    %67 = vector.broadcast %cst_16 : f32 to vector<8x8xf32>
    %68 = arith.select %65, %66, %67 : vector<8x8xi1>, vector<8x8xf32>
    %69 = math.exp %54 : vector<8x8xf32>
    %70 = math.exp %60 : vector<8x8xf32>
    %cst_17 = arith.constant 3.000000e+00 : f32
    %71 = vector.broadcast %cst_17 : f32 to vector<8x8xf32>
    %72 = arith.mulf %71, %70 : vector<8x8xf32>
    %73 = arith.addf %69, %72 : vector<8x8xf32>
    %74 = arith.mulf %68, %73 : vector<8x8xf32>
    %cst_18 = arith.constant dense<0.000000e+00> : vector<8xf32>
    %75 = vector.multi_reduction <add>, %74, %cst_18 [1] : vector<8x8xf32> to vector<8xf32>
    %76 = vector.shape_cast %75 : vector<8xf32> to vector<8x1xf32>
    %cst_19 = arith.constant dense<0.000000e+00> : vector<8xf32>
    %77 = vector.multi_reduction <add>, %54, %cst_19 [1] : vector<8x8xf32> to vector<8xf32>
    %78 = vector.shape_cast %77 : vector<8xf32> to vector<8x1xf32>
    %c0_20 = arith.constant 0 : index
    %c0_21 = arith.constant 0 : index
    %79 = vector.load %arg2[%c0_20, %c0_21] : memref<8x1xf32, #tpu.memory_space<vmem>>, vector<8x1xf32>
    tpu.vector_store %arg2[%c0_20, %c0_21], %78 {strides = array<i32>} : memref<8x1xf32, #tpu.memory_space<vmem>>, vector<8x1xf32>,
    %80 = math.log %76 : vector<8x1xf32>
    %c0_22 = arith.constant 0 : index
    %c0_23 = arith.constant 0 : index
    %81 = vector.load %arg3[%c0_22, %c0_23] : memref<8x1xf32, #tpu.memory_space<vmem>>, vector<8x1xf32>
    tpu.vector_store %arg3[%c0_22, %c0_23], %80 {strides = array<i32>} : memref<8x1xf32, #tpu.memory_space<vmem>>, vector<8x1xf32>,
    return
  }
  func.func @transform_0(%arg0: i32) -> (i32, i32) {
    %c0_i32 = arith.constant 0 : i32
    %c0_i32_0 = arith.constant 0 : i32
    %c0_i32_1 = arith.constant 0 : i32
    return %c0_i32, %c0_i32_0 : i32, i32
  }
  func.func @transform_1(%arg0: i32) -> (i32, i32) {
    %c0_i32 = arith.constant 0 : i32
    %c0_i32_0 = arith.constant 0 : i32
    return %arg0, %c0_i32 : i32, i32
  }
  func.func @transform_2(%arg0: i32) -> (i32, i32) {
    %c0_i32 = arith.constant 0 : i32
    %c0_i32_0 = arith.constant 0 : i32
    return %arg0, %c0_i32 : i32, i32
  }
}

</mosaic_0001>

<llo_original>
// kernel: pair_pair_supcon_loss.1
$region0: #{pair_pair_supcon_loss.1}
  #allocation0 [shape = 'u32[]', space=smem, size = 0x4, offset = 0x4, fixed_abs, tag = 'smem constant byte address 0x4 - core index']
  #allocation1 [shape = 'u32[144,128]{1,0:T(1,128)}', space=vmem, size = 0x12000, scoped, tag = 'internal scratch']
  %s0 = inlined_call_operand.hbm [shape: f32[8,32], index: 0, kind: input, shape index: {}]
  %s1 = inlined_call_operand.vmem [shape: f32[8,1], index: 1, kind: output, shape index: {0}]
  %s2 = inlined_call_operand.vmem [shape: f32[8,1], index: 2, kind: output, shape index: {1}]
  %3 = xla_tuple %s1, %s2
  %s4 = sld [smem:[#allocation0]]
  $region26: #{pair_pair_supcon_loss.1} parent=0
    _
  %s6 = ssub.s32 1, %s4
  %s7 = scalar_select 0, %s6, %s4
  $region1: #{pair_pair_supcon_loss.1} parent=0
    #allocation2 [shape = 'u8[4096]{0}', space=vmem, size = 0x1000, scoped, tag = 'input window, operand 0, single buffered']
    #allocation3 [shape = 's32[1]{0}', space=sflag, size = 0x4, scoped, tag = 'scoped memory for pair_pair_supcon_loss.1']
    %8 = vsyncpa [#allocation3], 0
    // Predicated region
    $region2: #{pair_pair_supcon_loss.1} parent=1 // pred_check
      _
    $region3: #{pair_pair_supcon_loss.1} parent=1 // pred_check_branch
      %10 = sbr.rel (0) target = $region5
    $region4: #{pair_pair_supcon_loss.1} parent=1 // pred_region
      %s12 = ssub.s32 128, 128
      %13 = vsyncadd [#allocation3], %s12
      %s15 = sshll.u32 [#allocation2], 4
      %s16 = int_to_ptr.vmem [resolvable:$true] %s15
      %18 = dma.hbm_to_vmem [thread:$0]  %s0, 128, %s16, [#allocation3]
    $region5: #{pair_pair_supcon_loss.1} parent=1 // pred_fallthru
      _
    // Predicated region
    $region6: #{pair_pair_supcon_loss.1} parent=1 // pred_check
      _
    $region7: #{pair_pair_supcon_loss.1} parent=1 // pred_check_branch
      %20 = sbr.rel (0) target = $region9
    $region8: #{pair_pair_supcon_loss.1} parent=1 // pred_region
      %21 = dma.done [#allocation3], 128
    $region9: #{pair_pair_supcon_loss.1} parent=1 // pred_fallthru
      _
    %v22 = vld [vmem:[#allocation2] sm:$0xff]
    %v23 = vmul.f32 %v22, %v22
    %vm24 = vcmask 261120
    %v25 = vsel %vm24, %v23, 0.0
    %26 = vadd.xlane.f32.xlu0 %v25
    %v27 = vpop.xlane.xlu0 %26
    %v28 = vmax.f32 %v27, 1e-24
    %v29 = vrsqrt.pop %v28
    %v30 = vmul.f32 %v22, %v29
    %v31 = vmul.f32 %v30, %v30
    %v32 = vmul.f32 %v31, %v31
    %s33 = smul.u32 0, 8
    %s34 = scalar_lea.vmem [#allocation2], %s33
    %v35 = vld [vmem:[%s34] sm:$0xff]
    %v36 = vmul.f32 %v35, %v35
    %v37 = vsel %vm24, %v36, 0.0
    %38 = vadd.xlane.f32.xlu0 %v37
    %v39 = vpop.xlane.xlu0 %38
    %v40 = vmax.f32 %v39, 1e-24
    %v41 = vrsqrt.pop %v40
    %v42 = vmul.f32 %v35, %v41
    %v43 = vmul.f32 %v42, %v42
    %v44 = vmul.f32 %v43, %v42
    %v45 = vmul.f32 %v43, %v43
    %v46 = vadd.f32 %v44, 1.0
    %v47 = vadd.f32 %v45, %v42
    %v48 = vmul.f32 %v46, %v46
    %v50 = vsel %vm24, %v47, 0
    %v53 = vsel %vm24, %v42, 0
    %v56 = vsel %vm24, %v30, 0
    %58 = vmatprep.subr.mxu0 0.0
    %59 = vmatpush1.xpose.msra.mxu0 %v56
    %60 = vmatprep.subr.mxu0 0.0
    %61 = vmatpush1.xpose.msra.mxu0 0.0
    %62 = vmatprep.subr.mxu0 0.0
    %63 = vmatpush1.xpose.msra.mxu0 0.0
    %64 = vmatprep.subr.mxu0 0.0
    %65 = vmatpush1.xpose.msra.mxu0 0.0
    %66 = vmatprep.subr.mxu0 0.0
    %67 = vmatpush1.xpose.msra.mxu0 0.0
    %68 = vmatprep.subr.mxu0 0.0
    %69 = vmatpush1.xpose.msra.mxu0 0.0
    %70 = vmatprep.subr.mxu0 0.0
    %71 = vmatpush1.xpose.msra.mxu0 0.0
    %72 = vmatprep.subr.mxu0 0.0
    %73 = vmatpush1.xpose.msra.mxu0 0.0
    %74 = vmatprep.subr.mxu0 0.0
    %75 = vmatpush1.xpose.msra.mxu0 0.0
    %76 = vmatprep.subr.mxu0 0.0
    %77 = vmatpush1.xpose.msra.mxu0 0.0
    %78 = vmatprep.subr.mxu0 0.0
    %79 = vmatpush1.xpose.msra.mxu0 0.0
    %80 = vmatprep.subr.mxu0 0.0
    %81 = vmatpush1.xpose.msra.mxu0 0.0
    %82 = vmatprep.subr.mxu0 0.0
    %83 = vmatpush1.xpose.msra.mxu0 0.0
    %84 = vmatprep.subr.mxu0 0.0
    %85 = vmatpush1.xpose.msra.mxu0 0.0
    %86 = vmatprep.subr.mxu0 0.0
    %87 = vmatpush1.xpose.msra.mxu0 0.0
    %88 = vmatprep.subr.mxu0 0.0
    %89 = vmatpush1.xpose.msra.mxu0 0.0
    %90 = vmatprep.subr.mxu0 0.0
    %91 = vmatpush1.xpose.msra.mxu0 0.0
    %92 = vmatprep.subr.mxu0 0.0
    %93 = vmatpush1.xpose.msra.mxu0 0.0
    %94 = vmatprep.subr.mxu0 0.0
    %95 = vmatpush1.xpose.msra.mxu0 0.0
    %96 = vmatprep.subr.mxu0 0.0
    %97 = vmatpush1.xpose.msra.mxu0 0.0
    %98 = vmatprep.subr.mxu0 0.0
    %99 = vmatpush1.xpose.msra.mxu0 0.0
    %100 = vmatprep.subr.mxu0 0.0
    %101 = vmatpush1.xpose.msra.mxu0 0.0
    %102 = vmatprep.subr.mxu0 0.0
    %103 = vmatpush1.xpose.msra.mxu0 0.0
    %104 = vmatprep.subr.mxu0 0.0
    %105 = vmatpush1.xpose.msra.mxu0 0.0
    %106 = vmatprep.subr.mxu0 0.0
    %107 = vmatpush1.xpose.msra.mxu0 0.0
    %108 = vmatprep.subr.mxu0 0.0
    %109 = vmatpush1.xpose.msra.mxu0 0.0
    %110 = vmatprep.subr.mxu0 0.0
    %111 = vmatpush1.xpose.msra.mxu0 0.0
    %112 = vmatprep.subr.mxu0 0.0
    %113 = vmatpush1.xpose.msra.mxu0 0.0
    %114 = vmatprep.subr.mxu0 0.0
    %115 = vmatpush1.xpose.msra.mxu0 0.0
    %116 = vmatprep.subr.mxu0 0.0
    %117 = vmatpush1.xpose.msra.mxu0 0.0
    %118 = vmatprep.subr.mxu0 0.0
    %119 = vmatpush1.xpose.msra.mxu0 0.0
    %120 = vmatprep.subr.mxu0 0.0
    %121 = vmatpush1.xpose.msra.mxu0 0.0
    %122 = vmatprep.mubr.f32.mxu0 0.0
    %123 = vmatmul.mubr.f32.gmra.mrb[0].mxu0 %v50
    %v124 = vpop.f32.mrb[0].mxu0
    %v125 = vadd.f32 0.0, %v124
    %v126 = vpop.f32.mrb[0].mxu0
    %127 = vmatprep.mubr.f32.mxu0 0.0
    %128 = vmatmul.mubr.f32.gmra.mrb[0].mxu0 %v53
    %v129 = vpop.f32.mrb[0].mxu0
    %v130 = vadd.f32 0.0, %v129
    %v131 = vpop.f32.mrb[0].mxu0
    %132 = vdwg.mxu0
    %v134 = vsel %vm24, %v48, 0
    %v137 = vsel %vm24, %v44, 0
    %v140 = vsel %vm24, %v31, 0
    %142 = vmatprep.subr.mxu0 0.0
    %143 = vmatpush1.xpose.msra.mxu0 %v140
    %144 = vmatprep.subr.mxu0 0.0
    %145 = vmatpush1.xpose.msra.mxu0 0.0
    %146 = vmatprep.subr.mxu0 0.0
    %147 = vmatpush1.xpose.msra.mxu0 0.0
    %148 = vmatprep.subr.mxu0 0.0
    %149 = vmatpush1.xpose.msra.mxu0 0.0
    %150 = vmatprep.subr.mxu0 0.0
    %151 = vmatpush1.xpose.msra.mxu0 0.0
    %152 = vmatprep.subr.mxu0 0.0
    %153 = vmatpush1.xpose.msra.mxu0 0.0
    %154 = vmatprep.subr.mxu0 0.0
    %155 = vmatpush1.xpose.msra.mxu0 0.0
    %156 = vmatprep.subr.mxu0 0.0
    %157 = vmatpush1.xpose.msra.mxu0 0.0
    %158 = vmatprep.subr.mxu0 0.0
    %159 = vmatpush1.xpose.msra.mxu0 0.0
    %160 = vmatprep.subr.mxu0 0.0
    %161 = vmatpush1.xpose.msra.mxu0 0.0
    %162 = vmatprep.subr.mxu0 0.0
    %163 = vmatpush1.xpose.msra.mxu0 0.0
    %164 = vmatprep.subr.mxu0 0.0
    %165 = vmatpush1.xpose.msra.mxu0 0.0
    %166 = vmatprep.subr.mxu0 0.0
    %167 = vmatpush1.xpose.msra.mxu0 0.0
    %168 = vmatprep.subr.mxu0 0.0
    %169 = vmatpush1.xpose.msra.mxu0 0.0
    %170 = vmatprep.subr.mxu0 0.0
    %171 = vmatpush1.xpose.msra.mxu0 0.0
    %172 = vmatprep.subr.mxu0 0.0
    %173 = vmatpush1.xpose.msra.mxu0 0.0
    %174 = vmatprep.subr.mxu0 0.0
    %175 = vmatpush1.xpose.msra.mxu0 0.0
    %176 = vmatprep.subr.mxu0 0.0
    %177 = vmatpush1.xpose.msra.mxu0 0.0
    %178 = vmatprep.subr.mxu0 0.0
    %179 = vmatpush1.xpose.msra.mxu0 0.0
    %180 = vmatprep.subr.mxu0 0.0
    %181 = vmatpush1.xpose.msra.mxu0 0.0
    %182 = vmatprep.subr.mxu0 0.0
    %183 = vmatpush1.xpose.msra.mxu0 0.0
    %184 = vmatprep.subr.mxu0 0.0
    %185 = vmatpush1.xpose.msra.mxu0 0.0
    %186 = vmatprep.subr.mxu0 0.0
    %187 = vmatpush1.xpose.msra.mxu0 0.0
    %188 = vmatprep.subr.mxu0 0.0
    %189 = vmatpush1.xpose.msra.mxu0 0.0
    %190 = vmatprep.subr.mxu0 0.0
    %191 = vmatpush1.xpose.msra.mxu0 0.0
    %192 = vmatprep.subr.mxu0 0.0
    %193 = vmatpush1.xpose.msra.mxu0 0.0
    %194 = vmatprep.subr.mxu0 0.0
    %195 = vmatpush1.xpose.msra.mxu0 0.0
    %196 = vmatprep.subr.mxu0 0.0
    %197 = vmatpush1.xpose.msra.mxu0 0.0
    %198 = vmatprep.subr.mxu0 0.0
    %199 = vmatpush1.xpose.msra.mxu0 0.0
    %200 = vmatprep.subr.mxu0 0.0
    %201 = vmatpush1.xpose.msra.mxu0 0.0
    %202 = vmatprep.subr.mxu0 0.0
    %203 = vmatpush1.xpose.msra.mxu0 0.0
    %204 = vmatprep.subr.mxu0 0.0
    %205 = vmatpush1.xpose.msra.mxu0 0.0
    %206 = vmatprep.mubr.f32.mxu0 0.0
    %207 = vmatmul.mubr.f32.gmra.mrb[0].mxu0 %v134
    %v208 = vpop.f32.mrb[0].mxu0
    %v209 = vadd.f32 0.0, %v208
    %v210 = vpop.f32.mrb[0].mxu0
    %211 = vmatprep.mubr.f32.mxu0 0.0
    %212 = vmatmul.mubr.f32.gmra.mrb[0].mxu0 %v137
    %v213 = vpop.f32.mrb[0].mxu0
    %v214 = vadd.f32 0.0, %v213
    %v215 = vpop.f32.mrb[0].mxu0
    %216 = vdwg.mxu0
    %217 = vxpose.xlu0.b32.start [1/16] %v214, 128
    %218 = vxpose.xlu0.b32.cont [2/16] 0.0, 128
    %219 = vxpose.xlu0.b32.cont [3/16] 0.0, 128
    %220 = vxpose.xlu0.b32.cont [4/16] 0.0, 128
    %221 = vxpose.xlu0.b32.cont [5/16] 0.0, 128
    %222 = vxpose.xlu0.b32.cont [6/16] 0.0, 128
    %223 = vxpose.xlu0.b32.cont [7/16] 0.0, 128
    %224 = vxpose.xlu0.b32.cont [8/16] 0.0, 128
    %225 = vxpose.xlu0.b32.cont [9/16] 0.0, 128
    %226 = vxpose.xlu0.b32.cont [10/16] 0.0, 128
    %227 = vxpose.xlu0.b32.cont [11/16] 0.0, 128
    %228 = vxpose.xlu0.b32.cont [12/16] 0.0, 128
    %229 = vxpose.xlu0.b32.cont [13/16] 0.0, 128
    %230 = vxpose.xlu0.b32.cont [14/16] 0.0, 128
    %231 = vxpose.xlu0.b32.cont [15/16] 0.0, 128
    %232 = vxpose.xlu0.b32.end [16/16] 0.0, 128
    %v233 = vpop.trf.xlu0
    %v234 = vpop.trf.xlu0
    %v235 = vpop.trf.xlu0
    %v236 = vpop.trf.xlu0
    %v237 = vpop.trf.xlu0
    %v238 = vpop.trf.xlu0
    %v239 = vpop.trf.xlu0
    %v240 = vpop.trf.xlu0
    %v241 = vpop.trf.xlu0
    %v242 = vpop.trf.xlu0
    %v243 = vpop.trf.xlu0
    %v244 = vpop.trf.xlu0
    %v245 = vpop.trf.xlu0
    %v246 = vpop.trf.xlu0
    %v247 = vpop.trf.xlu0
    %v248 = vpop.trf.xlu0
    %v249 = vadd.f32 %v214, %v130
    %v250 = vmul.f32 %v233, 2.0
    %v252 = vsel %vm24, %v45, 0
    %v255 = vsel %vm24, %v32, 0
    %257 = vmatprep.subr.mxu0 0.0
    %258 = vmatpush1.xpose.msra.mxu0 %v255
    %259 = vmatprep.subr.mxu0 0.0
    %260 = vmatpush1.xpose.msra.mxu0 0.0
    %261 = vmatprep.subr.mxu0 0.0
    %262 = vmatpush1.xpose.msra.mxu0 0.0
    %263 = vmatprep.subr.mxu0 0.0
    %264 = vmatpush1.xpose.msra.mxu0 0.0
    %265 = vmatprep.subr.mxu0 0.0
    %266 = vmatpush1.xpose.msra.mxu0 0.0
    %267 = vmatprep.subr.mxu0 0.0
    %268 = vmatpush1.xpose.msra.mxu0 0.0
    %269 = vmatprep.subr.mxu0 0.0
    %270 = vmatpush1.xpose.msra.mxu0 0.0
    %271 = vmatprep.subr.mxu0 0.0
    %272 = vmatpush1.xpose.msra.mxu0 0.0
    %273 = vmatprep.subr.mxu0 0.0
    %274 = vmatpush1.xpose.msra.mxu0 0.0
    %275 = vmatprep.subr.mxu0 0.0
    %276 = vmatpush1.xpose.msra.mxu0 0.0
    %277 = vmatprep.subr.mxu0 0.0
    %278 = vmatpush1.xpose.msra.mxu0 0.0
    %279 = vmatprep.subr.mxu0 0.0
    %280 = vmatpush1.xpose.msra.mxu0 0.0
    %281 = vmatprep.subr.mxu0 0.0
    %282 = vmatpush1.xpose.msra.mxu0 0.0
    %283 = vmatprep.subr.mxu0 0.0
    %284 = vmatpush1.xpose.msra.mxu0 0.0
    %285 = vmatprep.subr.mxu0 0.0
    %286 = vmatpush1.xpose.msra.mxu0 0.0
    %287 = vmatprep.subr.mxu0 0.0
    %288 = vmatpush1.xpose.msra.mxu0 0.0
    %289 = vmatprep.subr.mxu0 0.0
    %290 = vmatpush1.xpose.msra.mxu0 0.0
    %291 = vmatprep.subr.mxu0 0.0
    %292 = vmatpush1.xpose.msra.mxu0 0.0
    %293 = vmatprep.subr.mxu0 0.0
    %294 = vmatpush1.xpose.msra.mxu0 0.0
    %295 = vmatprep.subr.mxu0 0.0
    %296 = vmatpush1.xpose.msra.mxu0 0.0
    %297 = vmatprep.subr.mxu0 0.0
    %298 = vmatpush1.xpose.msra.mxu0 0.0
    %299 = vmatprep.subr.mxu0 0.0
    %300 = vmatpush1.xpose.msra.mxu0 0.0
    %301 = vmatprep.subr.mxu0 0.0
    %302 = vmatpush1.xpose.msra.mxu0 0.0
    %303 = vmatprep.subr.mxu0 0.0
    %304 = vmatpush1.xpose.msra.mxu0 0.0
    %305 = vmatprep.subr.mxu0 0.0
    %306 = vmatpush1.xpose.msra.mxu0 0.0
    %307 = vmatprep.subr.mxu0 0.0
    %308 = vmatpush1.xpose.msra.mxu0 0.0
    %309 = vmatprep.subr.mxu0 0.0
    %310 = vmatpush1.xpose.msra.mxu0 0.0
    %311 = vmatprep.subr.mxu0 0.0
    %312 = vmatpush1.xpose.msra.mxu0 0.0
    %313 = vmatprep.subr.mxu0 0.0
    %314 = vmatpush1.xpose.msra.mxu0 0.0
    %315 = vmatprep.subr.mxu0 0.0
    %316 = vmatpush1.xpose.msra.mxu0 0.0
    %317 = vmatprep.subr.mxu0 0.0
    %318 = vmatpush1.xpose.msra.mxu0 0.0
    %319 = vmatprep.subr.mxu0 0.0
    %320 = vmatpush1.xpose.msra.mxu0 0.0
    %321 = vmatprep.mubr.f32.mxu0 0.0
    %322 = vmatmul.mubr.f32.gmra.mrb[0].mxu0 %v252
    %v323 = vpop.f32.mrb[0].mxu0
    %v324 = vadd.f32 %v250, %v323
    %v325 = vpop.f32.mrb[0].mxu0
    %326 = vdwg.mxu0
    %v327 = vadd.f32 %v324, 1.0
    %v328 = vmax.f32 %v209, 1e-24
    %v329 = vrsqrt.pop %v328
    %v330 = vmul.f32 %v125, %v329
    %v331 = vmul.f32 %v330, 14.285714
    %v332 = vmax.f32 %v327, 1e-24
    %v333 = vrsqrt.pop %v332
    %v334 = vmul.f32 %v249, %v333
    %v335 = vmul.f32 %v334, 14.285714
    %v336 = vlaneseq
    %v337 = vshrl.u32 %v336, 7
    %v338 = vstv %s33
    %v339 = vadd.s32 %v338, %v337
    %v340 = vlaneseq
    %v341 = vand.u32 %v340, 127
    %vm342 = vcmp.eq.s32.totalorder %v339, %v341
    %v343 = vsel %vm342, 0.0, 1.0
    %v344 = vmul.f32 %v331, 1.442695
    %v345 = vpow.pop %v344
    %v346 = vmul.f32 %v335, 1.442695
    %v347 = vpow.pop %v346
    %v348 = vmul.f32 %v347, 3.0
    %v349 = vadd.f32 %v345, %v348
    %v350 = vmul.f32 %v343, %v349
    %vm351 = vcmask 64512
    %v352 = vsel %vm351, %v350, 0.0
    %353 = vadd.xlane.f32.xlu0 %v352
    %v354 = vpop.xlane.xlu0 %353
    %v355 = vsel %vm351, %v331, 0.0
    %356 = vadd.xlane.f32.xlu0 %v355
    %v357 = vpop.xlane.xlu0 %356
    %vm358 = vcmask 7168
    %359 = vst.msk [vmem:[%s1] sm:$0xff] %vm358, %v357
    %v360 = vlog2.pop %v354
    %v361 = vmul.f32 %v360, 0.6931472
    %362 = vst.msk [vmem:[%s2] sm:$0xff] %vm358, %v361
    // Predicated region
    $region10: #{pair_pair_supcon_loss.1} parent=1 // pred_check
      _
    $region11: #{pair_pair_supcon_loss.1} parent=1 // pred_check_branch
      %364 = sbr.rel (0) target = $region13
    $region12: #{pair_pair_supcon_loss.1} parent=1 // pred_region
      _
    $region13: #{pair_pair_supcon_loss.1} parent=1 // pred_fallthru
      _
    // Predicated region
    $region14: #{pair_pair_supcon_loss.1} parent=1 // pred_check
      _
    $region15: #{pair_pair_supcon_loss.1} parent=1 // pred_check_branch
      %366 = sbr.rel (0) target = $region17
    $region16: #{pair_pair_supcon_loss.1} parent=1 // pred_region
      _
    $region17: #{pair_pair_supcon_loss.1} parent=1 // pred_fallthru
      _
    // Predicated region
    $region18: #{pair_pair_supcon_loss.1} parent=1 // pred_check
      _
    $region19: #{pair_pair_supcon_loss.1} parent=1 // pred_check_branch
      %368 = sbr.rel (0) target = $region21
    $region20: #{pair_pair_supcon_loss.1} parent=1 // pred_region
      _
    $region21: #{pair_pair_supcon_loss.1} parent=1 // pred_fallthru
      _
    // Predicated region
    $region22: #{pair_pair_supcon_loss.1} parent=1 // pred_check
      _
    $region23: #{pair_pair_supcon_loss.1} parent=1 // pred_check_branch
      %370 = sbr.rel (0) target = $region25
    $region24: #{pair_pair_supcon_loss.1} parent=1 // pred_region
      _
    $region25: #{pair_pair_supcon_loss.1} parent=1 // pred_fallthru
      _
    %371 = vsyncpa [#allocation3], 1

</llo_original>
